<compile_context>
chip_gen: v5e
topology: v5e:2x2
jax: 0.10.0
libtpu: 0.0.40
codegen_flags: <defaults>
</compile_context>

<pallas_src>
import jax
import jax.numpy as jnp
from jax.experimental import pallas as pl
from jax.experimental.pallas import tpu as pltpu


def _wlp_kernel(*refs):
    """refs = (w_norm_smem, x_0, ..., x_{L-1}, out).

    out = sum_l w_norm[l] * x_l, accumulated in f32 (weights pre-normalized).
    """
    w_ref = refs[0]
    o_ref = refs[-1]
    x_refs = refs[1:-1]

    acc = w_ref[0] * x_refs[0][...].astype(jnp.float32)
    for l in range(1, len(x_refs)):
        acc = acc + w_ref[l] * x_refs[l][...].astype(jnp.float32)

    o_ref[...] = acc.astype(o_ref.dtype)


def _vmem_budget_bytes():
    """Generation-aware (budget_for_tiles, explicit vmem_limit_bytes)."""
    try:
        cap = int(pltpu.get_tpu_info().vmem_capacity_bytes)
    except Exception:  # query unavailable -> be conservative (v7x per-core VMEM)
        cap = 64 * 1024 * 1024
    budget = min(40 * 1024 * 1024, cap // 2)          # tile-selection budget
    limit = min((cap * 3) // 4, 64 * 1024 * 1024)     # scoped-VMEM limit
    return budget, limit


def _choose_tiles(rows, cols, num_layers, itemsize, budget_bytes):
    """Pick (row_tile, col_tile) keeping L double-buffered inputs + output in VMEM."""
    sub = max(8, 32 // max(itemsize, 1))   # sublane packing: 8 f32 / 16 bf16 / 32 int8
    lane = 128

    def footprint(tr, tc):
        # L double-buffered inputs + double-buffered output + f32-acc headroom.
        return tr * tc * ((2 * num_layers + 2) * itemsize + 2 * 4)

    # Column tile: full width unless even the minimum row tile does not fit.
    tc = cols
    if rows >= sub and cols % lane == 0 and footprint(sub, cols) > budget_bytes:
        tc = lane
        while (tc * 2 <= cols and cols % (tc * 2) == 0
               and footprint(sub, tc * 2) <= budget_bytes):
            tc *= 2

    if rows <= sub:
        tr = rows                       # full extent is always a legal block dim
    else:
        tr = budget_bytes // max(footprint(1, tc), 1)
        tr = max(sub, (tr // sub) * sub)
        # Keep >=4 grid steps (megacore + DMA/compute overlap) when possible.
        quarter = (rows // 4 // sub) * sub
        half = (rows // 2 // sub) * sub
        if quarter >= sub:
            tr = min(tr, quarter)
        elif half >= sub:
            tr = min(tr, half)
        tr = max(sub, min(tr, rows, 4096))
    return tr, tc


def weighted_layer_pooling(all_hidden_states, layer_weights):
    """Forward pass of WeightedLayerPooling.

    all_hidden_states: sequence of arrays, each (B, T, D).
    layer_weights:     (layers,) float parameter.
    Returns (B, T, D) weighted average over the last `layers` hidden states.
    """
    layers = int(layer_weights.shape[0])
    hs = list(all_hidden_states)[-layers:]
    assert len(hs) == layers, "need at least `layers` hidden states"
    B, T, D = hs[0].shape
    dtype = hs[0].dtype
    itemsize = jnp.dtype(dtype).itemsize
    N = B * T * D

    # Lane-dense re-layout: prefer a (rows, cols) view with cols % 128 == 0.
    if D % 128 == 0:
        rows, cols = B * T, D
    else:
        cols = 0
        for c in (1024, 512, 256, 128):
            if N % c == 0:
                cols = c
                break
        if cols:
            rows = N // cols
        else:
            rows, cols = B * T, D       # full-D blocks are always legal

    xs = [h.reshape(rows, cols) for h in hs]        # contiguous view, no HBM copy

    budget_bytes, vmem_limit = _vmem_budget_bytes()
    tr, tc = _choose_tiles(rows, cols, layers, itemsize, budget_bytes)

    nr = pl.cdiv(rows, tr)
    nc = pl.cdiv(cols, tc)
    if nc == 1:
        grid = (nr,)
        idx = lambda i: (i, 0)
        sem = ("parallel",)
    else:
        grid = (nr, nc)
        idx = lambda i, j: (i, j)
        sem = ("parallel", "parallel")

    x_spec = pl.BlockSpec((tr, tc), idx)
    w_spec = pl.BlockSpec(memory_space=pltpu.MemorySpace.SMEM)   # (L,) scalars

    # Pre-normalize weights: kernel does pure FMA, no per-tile divide.
    w_norm = (layer_weights / jnp.sum(layer_weights)).astype(jnp.float32)

    out = pl.pallas_call(
        _wlp_kernel,
        out_shape=jax.ShapeDtypeStruct((rows, cols), dtype),
        grid=grid,
        in_specs=[w_spec] + [x_spec] * layers,
        out_specs=pl.BlockSpec((tr, tc), idx),
        compiler_params=pltpu.CompilerParams(
            dimension_semantics=sem,
            vmem_limit_bytes=int(vmem_limit)),
    )(w_norm, *xs)

    return out.reshape(B, T, D)


# ---- pure-JAX reference (mirrors the PyTorch forward) ----
def _wlp_ref(all_hidden_states, layer_weights):
    layers = layer_weights.shape[0]
    hs = jnp.stack(all_hidden_states, axis=0)[-layers:]     # (L, B, T, D)
    wf = layer_weights[:, None, None, None]
    return (wf * hs).sum(axis=0) / layer_weights.sum()


if __name__ == "__main__":
    LAYERS = 12
    NUM_HIDDEN_STATES = 13   # e.g. embeddings + 12 transformer layers
    B, T, D = 2, 8, 32

    key = jax.random.PRNGKey(0)
    keys = jax.random.split(key, NUM_HIDDEN_STATES + 1)
    all_hidden_states = tuple(
        jax.random.normal(keys[i], (B, T, D), jnp.float32)
        for i in range(NUM_HIDDEN_STATES))
    # nn.Parameter init is all-ones; perturb so the weighting is non-trivial.
    layer_weights = 1.0 + 0.1 * jax.random.normal(keys[-1], (LAYERS,), jnp.float32)

    out = weighted_layer_pooling(all_hidden_states, layer_weights)
    out = jax.block_until_ready(out)
    assert out.shape == (B, T, D), out.shape

    ref = _wlp_ref(all_hidden_states, layer_weights)
    assert jnp.allclose(out, ref, atol=1e-5, rtol=1e-5), "mismatch vs reference"

    print("KERNEL_OK")
</pallas_src>

<mosaic_0001>
module attributes {stable_mosaic.version = 11 : i64} {
  func.func @_wlp_kernel(%arg0: i32, %arg1: memref<12xf32, #tpu.memory_space<smem>>, %arg2: memref<1x512xf32, #tpu.memory_space<vmem>>, %arg3: memref<1x512xf32, #tpu.memory_space<vmem>>, %arg4: memref<1x512xf32, #tpu.memory_space<vmem>>, %arg5: memref<1x512xf32, #tpu.memory_space<vmem>>, %arg6: memref<1x512xf32, #tpu.memory_space<vmem>>, %arg7: memref<1x512xf32, #tpu.memory_space<vmem>>, %arg8: memref<1x512xf32, #tpu.memory_space<vmem>>, %arg9: memref<1x512xf32, #tpu.memory_space<vmem>>, %arg10: memref<1x512xf32, #tpu.memory_space<vmem>>, %arg11: memref<1x512xf32, #tpu.memory_space<vmem>>, %arg12: memref<1x512xf32, #tpu.memory_space<vmem>>, %arg13: memref<1x512xf32, #tpu.memory_space<vmem>>, %arg14: memref<1x512xf32, #tpu.memory_space<vmem>>) attributes {dimension_semantics = [#tpu.dimension_semantics<parallel>], iteration_bounds = array<i64: 1>, scalar_prefetch = 0 : i64, scratch_operands = 0 : i64, tpu.core_type = #tpu.core_type<tc>, window_params = [{transform_indices = @transform_0, window_bounds = array<i64: 12>}, {transform_indices = @transform_1, window_bounds = array<i64: 1, 512>}, {transform_indices = @transform_2, window_bounds = array<i64: 1, 512>}, {transform_indices = @transform_3, window_bounds = array<i64: 1, 512>}, {transform_indices = @transform_4, window_bounds = array<i64: 1, 512>}, {transform_indices = @transform_5, window_bounds = array<i64: 1, 512>}, {transform_indices = @transform_6, window_bounds = array<i64: 1, 512>}, {transform_indices = @transform_7, window_bounds = array<i64: 1, 512>}, {transform_indices = @transform_8, window_bounds = array<i64: 1, 512>}, {transform_indices = @transform_9, window_bounds = array<i64: 1, 512>}, {transform_indices = @transform_10, window_bounds = array<i64: 1, 512>}, {transform_indices = @transform_11, window_bounds = array<i64: 1, 512>}, {transform_indices = @transform_12, window_bounds = array<i64: 1, 512>}, {transform_indices = @transform_13, window_bounds = array<i64: 1, 512>}]} {
    %c0 = arith.constant 0 : index
    %0 = memref.load %arg1[%c0] : memref<12xf32, #tpu.memory_space<smem>>
    %c0_0 = arith.constant 0 : index
    %c0_1 = arith.constant 0 : index
    %1 = vector.load %arg2[%c0_0, %c0_1] : memref<1x512xf32, #tpu.memory_space<vmem>>, vector<1x512xf32>
    %2 = vector.broadcast %0 : f32 to vector<1x512xf32>
    %3 = arith.mulf %2, %1 : vector<1x512xf32>
    %c1 = arith.constant 1 : index
    %4 = memref.load %arg1[%c1] : memref<12xf32, #tpu.memory_space<smem>>
    %c0_2 = arith.constant 0 : index
    %c0_3 = arith.constant 0 : index
    %5 = vector.load %arg3[%c0_2, %c0_3] : memref<1x512xf32, #tpu.memory_space<vmem>>, vector<1x512xf32>
    %6 = vector.broadcast %4 : f32 to vector<1x512xf32>
    %7 = arith.mulf %6, %5 : vector<1x512xf32>
    %8 = arith.addf %3, %7 : vector<1x512xf32>
    %c2 = arith.constant 2 : index
    %9 = memref.load %arg1[%c2] : memref<12xf32, #tpu.memory_space<smem>>
    %c0_4 = arith.constant 0 : index
    %c0_5 = arith.constant 0 : index
    %10 = vector.load %arg4[%c0_4, %c0_5] : memref<1x512xf32, #tpu.memory_space<vmem>>, vector<1x512xf32>
    %11 = vector.broadcast %9 : f32 to vector<1x512xf32>
    %12 = arith.mulf %11, %10 : vector<1x512xf32>
    %13 = arith.addf %8, %12 : vector<1x512xf32>
    %c3 = arith.constant 3 : index
    %14 = memref.load %arg1[%c3] : memref<12xf32, #tpu.memory_space<smem>>
    %c0_6 = arith.constant 0 : index
    %c0_7 = arith.constant 0 : index
    %15 = vector.load %arg5[%c0_6, %c0_7] : memref<1x512xf32, #tpu.memory_space<vmem>>, vector<1x512xf32>
    %16 = vector.broadcast %14 : f32 to vector<1x512xf32>
    %17 = arith.mulf %16, %15 : vector<1x512xf32>
    %18 = arith.addf %13, %17 : vector<1x512xf32>
    %c4 = arith.constant 4 : index
    %19 = memref.load %arg1[%c4] : memref<12xf32, #tpu.memory_space<smem>>
    %c0_8 = arith.constant 0 : index
    %c0_9 = arith.constant 0 : index
    %20 = vector.load %arg6[%c0_8, %c0_9] : memref<1x512xf32, #tpu.memory_space<vmem>>, vector<1x512xf32>
    %21 = vector.broadcast %19 : f32 to vector<1x512xf32>
    %22 = arith.mulf %21, %20 : vector<1x512xf32>
    %23 = arith.addf %18, %22 : vector<1x512xf32>
    %c5 = arith.constant 5 : index
    %24 = memref.load %arg1[%c5] : memref<12xf32, #tpu.memory_space<smem>>
    %c0_10 = arith.constant 0 : index
    %c0_11 = arith.constant 0 : index
    %25 = vector.load %arg7[%c0_10, %c0_11] : memref<1x512xf32, #tpu.memory_space<vmem>>, vector<1x512xf32>
    %26 = vector.broadcast %24 : f32 to vector<1x512xf32>
    %27 = arith.mulf %26, %25 : vector<1x512xf32>
    %28 = arith.addf %23, %27 : vector<1x512xf32>
    %c6 = arith.constant 6 : index
    %29 = memref.load %arg1[%c6] : memref<12xf32, #tpu.memory_space<smem>>
    %c0_12 = arith.constant 0 : index
    %c0_13 = arith.constant 0 : index
    %30 = vector.load %arg8[%c0_12, %c0_13] : memref<1x512xf32, #tpu.memory_space<vmem>>, vector<1x512xf32>
    %31 = vector.broadcast %29 : f32 to vector<1x512xf32>
    %32 = arith.mulf %31, %30 : vector<1x512xf32>
    %33 = arith.addf %28, %32 : vector<1x512xf32>
    %c7 = arith.constant 7 : index
    %34 = memref.load %arg1[%c7] : memref<12xf32, #tpu.memory_space<smem>>
    %c0_14 = arith.constant 0 : index
    %c0_15 = arith.constant 0 : index
    %35 = vector.load %arg9[%c0_14, %c0_15] : memref<1x512xf32, #tpu.memory_space<vmem>>, vector<1x512xf32>
    %36 = vector.broadcast %34 : f32 to vector<1x512xf32>
    %37 = arith.mulf %36, %35 : vector<1x512xf32>
    %38 = arith.addf %33, %37 : vector<1x512xf32>
    %c8 = arith.constant 8 : index
    %39 = memref.load %arg1[%c8] : memref<12xf32, #tpu.memory_space<smem>>
    %c0_16 = arith.constant 0 : index
    %c0_17 = arith.constant 0 : index
    %40 = vector.load %arg10[%c0_16, %c0_17] : memref<1x512xf32, #tpu.memory_space<vmem>>, vector<1x512xf32>
    %41 = vector.broadcast %39 : f32 to vector<1x512xf32>
    %42 = arith.mulf %41, %40 : vector<1x512xf32>
    %43 = arith.addf %38, %42 : vector<1x512xf32>
    %c9 = arith.constant 9 : index
    %44 = memref.load %arg1[%c9] : memref<12xf32, #tpu.memory_space<smem>>
    %c0_18 = arith.constant 0 : index
    %c0_19 = arith.constant 0 : index
    %45 = vector.load %arg11[%c0_18, %c0_19] : memref<1x512xf32, #tpu.memory_space<vmem>>, vector<1x512xf32>
    %46 = vector.broadcast %44 : f32 to vector<1x512xf32>
    %47 = arith.mulf %46, %45 : vector<1x512xf32>
    %48 = arith.addf %43, %47 : vector<1x512xf32>
    %c10 = arith.constant 10 : index
    %49 = memref.load %arg1[%c10] : memref<12xf32, #tpu.memory_space<smem>>
    %c0_20 = arith.constant 0 : index
    %c0_21 = arith.constant 0 : index
    %50 = vector.load %arg12[%c0_20, %c0_21] : memref<1x512xf32, #tpu.memory_space<vmem>>, vector<1x512xf32>
    %51 = vector.broadcast %49 : f32 to vector<1x512xf32>
    %52 = arith.mulf %51, %50 : vector<1x512xf32>
    %53 = arith.addf %48, %52 : vector<1x512xf32>
    %c11 = arith.constant 11 : index
    %54 = memref.load %arg1[%c11] : memref<12xf32, #tpu.memory_space<smem>>
    %c0_22 = arith.constant 0 : index
    %c0_23 = arith.constant 0 : index
    %55 = vector.load %arg13[%c0_22, %c0_23] : memref<1x512xf32, #tpu.memory_space<vmem>>, vector<1x512xf32>
    %56 = vector.broadcast %54 : f32 to vector<1x512xf32>
    %57 = arith.mulf %56, %55 : vector<1x512xf32>
    %58 = arith.addf %53, %57 : vector<1x512xf32>
    %c0_24 = arith.constant 0 : index
    %c0_25 = arith.constant 0 : index
    %59 = vector.load %arg14[%c0_24, %c0_25] : memref<1x512xf32, #tpu.memory_space<vmem>>, vector<1x512xf32>
    tpu.vector_store %arg14[%c0_24, %c0_25], %58 {strides = array<i32>} : memref<1x512xf32, #tpu.memory_space<vmem>>, vector<1x512xf32>,
    return
  }
  func.func @transform_0(%arg0: i32) -> i32 {
    %c0_i32 = arith.constant 0 : i32
    %c0_i32_0 = arith.constant 0 : i32
    return %c0_i32 : i32
  }
  func.func @transform_1(%arg0: i32) -> (i32, i32) {
    %c0_i32 = arith.constant 0 : i32
    %c0_i32_0 = arith.constant 0 : i32
    return %arg0, %c0_i32 : i32, i32
  }
  func.func @transform_2(%arg0: i32) -> (i32, i32) {
    %c0_i32 = arith.constant 0 : i32
    %c0_i32_0 = arith.constant 0 : i32
    return %arg0, %c0_i32 : i32, i32
  }
  func.func @transform_3(%arg0: i32) -> (i32, i32) {
    %c0_i32 = arith.constant 0 : i32
    %c0_i32_0 = arith.constant 0 : i32
    return %arg0, %c0_i32 : i32, i32
  }
  func.func @transform_4(%arg0: i32) -> (i32, i32) {
    %c0_i32 = arith.constant 0 : i32
    %c0_i32_0 = arith.constant 0 : i32
    return %arg0, %c0_i32 : i32, i32
  }
  func.func @transform_5(%arg0: i32) -> (i32, i32) {
    %c0_i32 = arith.constant 0 : i32
    %c0_i32_0 = arith.constant 0 : i32
    return %arg0, %c0_i32 : i32, i32
  }
  func.func @transform_6(%arg0: i32) -> (i32, i32) {
    %c0_i32 = arith.constant 0 : i32
    %c0_i32_0 = arith.constant 0 : i32
    return %arg0, %c0_i32 : i32, i32
  }
  func.func @transform_7(%arg0: i32) -> (i32, i32) {
    %c0_i32 = arith.constant 0 : i32
    %c0_i32_0 = arith.constant 0 : i32
    return %arg0, %c0_i32 : i32, i32
  }
  func.func @transform_8(%arg0: i32) -> (i32, i32) {
    %c0_i32 = arith.constant 0 : i32
    %c0_i32_0 = arith.constant 0 : i32
    return %arg0, %c0_i32 : i32, i32
  }
  func.func @transform_9(%arg0: i32) -> (i32, i32) {
    %c0_i32 = arith.constant 0 : i32
    %c0_i32_0 = arith.constant 0 : i32
    return %arg0, %c0_i32 : i32, i32
  }
  func.func @transform_10(%arg0: i32) -> (i32, i32) {
    %c0_i32 = arith.constant 0 : i32
    %c0_i32_0 = arith.constant 0 : i32
    return %arg0, %c0_i32 : i32, i32
  }
  func.func @transform_11(%arg0: i32) -> (i32, i32) {
    %c0_i32 = arith.constant 0 : i32
    %c0_i32_0 = arith.constant 0 : i32
    return %arg0, %c0_i32 : i32, i32
  }
  func.func @transform_12(%arg0: i32) -> (i32, i32) {
    %c0_i32 = arith.constant 0 : i32
    %c0_i32_0 = arith.constant 0 : i32
    return %arg0, %c0_i32 : i32, i32
  }
  func.func @transform_13(%arg0: i32) -> (i32, i32) {
    %c0_i32 = arith.constant 0 : i32
    %c0_i32_0 = arith.constant 0 : i32
    return %arg0, %c0_i32 : i32, i32
  }
}

</mosaic_0001>

<llo_original>
// kernel: tpu_custom_call.1
$region0: #{tpu_custom_call.1}
  #allocation0 [shape = 'u32[]', space=smem, size = 0x4, offset = 0x4, fixed_abs, tag = 'smem constant byte address 0x4 - core index']
  #allocation1 [shape = 'u32[72,128]{1,0:T(1,128)}', space=vmem, size = 0x9000, scoped, tag = 'internal scratch']
  %s0 = inlined_call_operand.hbm [shape: f32[12], index: 0, kind: input, shape index: {}]
  %s1 = inlined_call_operand.hbm [shape: f32[1,512], index: 1, kind: input, shape index: {}]
  %s2 = inlined_call_operand.hbm [shape: f32[1,512], index: 2, kind: input, shape index: {}]
  %s3 = inlined_call_operand.hbm [shape: f32[1,512], index: 3, kind: input, shape index: {}]
  %s4 = inlined_call_operand.hbm [shape: f32[1,512], index: 4, kind: input, shape index: {}]
  %s5 = inlined_call_operand.vmem [shape: f32[1,512], index: 5, kind: input, shape index: {}]
  %s6 = inlined_call_operand.hbm [shape: f32[1,512], index: 6, kind: input, shape index: {}]
  %s7 = inlined_call_operand.hbm [shape: f32[1,512], index: 7, kind: input, shape index: {}]
  %s8 = inlined_call_operand.hbm [shape: f32[1,512], index: 8, kind: input, shape index: {}]
  %s9 = inlined_call_operand.vmem [shape: f32[1,512], index: 9, kind: input, shape index: {}]
  %s10 = inlined_call_operand.hbm [shape: f32[1,512], index: 10, kind: input, shape index: {}]
  %s11 = inlined_call_operand.hbm [shape: f32[1,512], index: 11, kind: input, shape index: {}]
  %s12 = inlined_call_operand.hbm [shape: f32[1,512], index: 12, kind: input, shape index: {}]
  %s13 = inlined_call_operand.hbm [shape: f32[1,512], index: 13, kind: output, shape index: {}]
  %s14 = sld [smem:[#allocation0]]
  $region106: #{tpu_custom_call.1} parent=0
    _
  %s16 = ssub.s32 1, %s14
  %s17 = scalar_select 0, %s16, %s14
  $region1: #{tpu_custom_call.1} parent=0
    #allocation2 [shape = 'u8[512]{0}', space=smem, size = 0x200, scoped, tag = 'input window, operand 0, single buffered']
    #allocation3 [shape = 's32[1]{0}', space=sflag, size = 0x4, scoped, tag = 'scoped memory for tpu_custom_call.1']
    #allocation4 [shape = 's32[1]{0}', space=sflag, size = 0x4, scoped, tag = 'scoped memory for tpu_custom_call.1']
    #allocation5 [shape = 's32[1]{0}', space=sflag, size = 0x4, scoped, tag = 'scoped memory for tpu_custom_call.1']
    #allocation6 [shape = 'u8[2048]{0}', space=vmem, size = 0x800, scoped, tag = 'input window, operand 1, single buffered']
    #allocation7 [shape = 'u8[2048]{0}', space=vmem, size = 0x800, scoped, tag = 'input window, operand 2, single buffered']
    #allocation8 [shape = 's32[1]{0}', space=sflag, size = 0x4, scoped, tag = 'scoped memory for tpu_custom_call.1']
    #allocation9 [shape = 'u8[2048]{0}', space=vmem, size = 0x800, scoped, tag = 'input window, operand 3, single buffered']
    #allocation10 [shape = 'u8[2048]{0}', space=vmem, size = 0x800, scoped, tag = 'input window, operand 4, single buffered']
    #allocation11 [shape = 's32[1]{0}', space=sflag, size = 0x4, scoped, tag = 'scoped memory for tpu_custom_call.1']
    #allocation12 [shape = 'u8[2048]{0}', space=vmem, size = 0x800, scoped, tag = 'input window, operand 6, single buffered']
    #allocation13 [shape = 'u8[2048]{0}', space=vmem, size = 0x800, scoped, tag = 'input window, operand 7, single buffered']
    #allocation14 [shape = 's32[1]{0}', space=sflag, size = 0x4, scoped, tag = 'scoped memory for tpu_custom_call.1']
    #allocation15 [shape = 'u8[2048]{0}', space=vmem, size = 0x800, scoped, tag = 'input window, operand 8, single buffered']
    #allocation16 [shape = 'u8[2048]{0}', space=vmem, size = 0x800, scoped, tag = 'input window, operand 10, single buffered']
    #allocation17 [shape = 's32[1]{0}', space=sflag, size = 0x4, scoped, tag = 'scoped memory for tpu_custom_call.1']
    #allocation18 [shape = 'u8[2048]{0}', space=vmem, size = 0x800, scoped, tag = 'input window, operand 11, single buffered']
    #allocation19 [shape = 'u8[2048]{0}', space=vmem, size = 0x800, scoped, tag = 'input window, operand 12, single buffered']
    #allocation20 [shape = 's32[1]{0}', space=sflag, size = 0x4, scoped, tag = 'scoped memory for tpu_custom_call.1']
    #allocation21 [shape = 'u8[2048]{0}', space=vmem, size = 0x800, scoped, tag = 'output window, operand 0, single buffered']
    %18 = vsyncpa [#allocation5], 0
    %19 = vsyncpa [#allocation3], 0
    %20 = vsyncpa [#allocation8], 0
    %21 = vsyncpa [#allocation11], 0
    %22 = vsyncpa [#allocation14], 0
    %23 = vsyncpa [#allocation17], 0
    %24 = vsyncpa [#allocation20], 0
    %25 = vsyncpa [#allocation4], 0
    // Predicated region
    $region2: #{tpu_custom_call.1} parent=1 // pred_check
      _
    $region3: #{tpu_custom_call.1} parent=1 // pred_check_branch
      %27 = sbr.rel (0) target = $region5
    $region4: #{tpu_custom_call.1} parent=1 // pred_region
      %29 = vsyncadd [#allocation5], 0
      %s31 = sshll.u32 %s0, 4
      %s32 = int_to_ptr.hbm [resolvable:$true] %s31
      %34 = dma.hbm_to_smem %s32, 16, [#allocation2], [#allocation5]
    $region5: #{tpu_custom_call.1} parent=1 // pred_fallthru
      _
    // Predicated region
    $region6: #{tpu_custom_call.1} parent=1 // pred_check
      _
    $region7: #{tpu_custom_call.1} parent=1 // pred_check_branch
      %36 = sbr.rel (0) target = $region9
    $region8: #{tpu_custom_call.1} parent=1 // pred_region
      %38 = vsyncadd [#allocation3], 0
      %s40 = sshll.u32 %s1, 4
      %s41 = int_to_ptr.hbm [resolvable:$true] %s40
      %s42 = sshll.u32 [#allocation6], 4
      %s43 = int_to_ptr.vmem [resolvable:$true] %s42
      %45 = dma.hbm_to_vmem [thread:$0]  %s41, 64, %s43, [#allocation3]
    $region9: #{tpu_custom_call.1} parent=1 // pred_fallthru
      _
    // Predicated region
    $region10: #{tpu_custom_call.1} parent=1 // pred_check
      _
    $region11: #{tpu_custom_call.1} parent=1 // pred_check_branch
      %47 = sbr.rel (0) target = $region13
    $region12: #{tpu_custom_call.1} parent=1 // pred_region
      %49 = vsyncadd [#allocation8], 0
      %s51 = sshll.u32 %s2, 4
      %s52 = int_to_ptr.hbm [resolvable:$true] %s51
      %s53 = sshll.u32 [#allocation7], 4
      %s54 = int_to_ptr.vmem [resolvable:$true] %s53
      %56 = dma.hbm_to_vmem [thread:$0]  %s52, 64, %s54, [#allocation8]
    $region13: #{tpu_custom_call.1} parent=1 // pred_fallthru
      _
    // Predicated region
    $region14: #{tpu_custom_call.1} parent=1 // pred_check
      _
    $region15: #{tpu_custom_call.1} parent=1 // pred_check_branch
      %58 = sbr.rel (0) target = $region17
    $region16: #{tpu_custom_call.1} parent=1 // pred_region
      %60 = vsyncadd [#allocation8], 0
      %s62 = sshll.u32 %s3, 4
      %s63 = int_to_ptr.hbm [resolvable:$true] %s62
      %s64 = sshll.u32 [#allocation9], 4
      %s65 = int_to_ptr.vmem [resolvable:$true] %s64
      %67 = dma.hbm_to_vmem [thread:$0]  %s63, 64, %s65, [#allocation8]
    $region17: #{tpu_custom_call.1} parent=1 // pred_fallthru
      _
    // Predicated region
    $region18: #{tpu_custom_call.1} parent=1 // pred_check
      _
    $region19: #{tpu_custom_call.1} parent=1 // pred_check_branch
      %69 = sbr.rel (0) target = $region21
    $region20: #{tpu_custom_call.1} parent=1 // pred_region
      %71 = vsyncadd [#allocation11], 0
      %s73 = sshll.u32 %s4, 4
      %s74 = int_to_ptr.hbm [resolvable:$true] %s73
      %s75 = sshll.u32 [#allocation10], 4
      %s76 = int_to_ptr.vmem [resolvable:$true] %s75
      %78 = dma.hbm_to_vmem [thread:$0]  %s74, 64, %s76, [#allocation11]
    $region21: #{tpu_custom_call.1} parent=1 // pred_fallthru
      _
    // Predicated region
    $region22: #{tpu_custom_call.1} parent=1 // pred_check
      _
    $region23: #{tpu_custom_call.1} parent=1 // pred_check_branch
      %80 = sbr.rel (0) target = $region25
    $region24: #{tpu_custom_call.1} parent=1 // pred_region
      _
    $region25: #{tpu_custom_call.1} parent=1 // pred_fallthru
      _
    // Predicated region
    $region26: #{tpu_custom_call.1} parent=1 // pred_check
      _
    $region27: #{tpu_custom_call.1} parent=1 // pred_check_branch
      %82 = sbr.rel (0) target = $region29
    $region28: #{tpu_custom_call.1} parent=1 // pred_region
      %84 = vsyncadd [#allocation11], 0
      %s86 = sshll.u32 %s6, 4
      %s87 = int_to_ptr.hbm [resolvable:$true] %s86
      %s88 = sshll.u32 [#allocation12], 4
      %s89 = int_to_ptr.vmem [resolvable:$true] %s88
      %91 = dma.hbm_to_vmem [thread:$0]  %s87, 64, %s89, [#allocation11]
    $region29: #{tpu_custom_call.1} parent=1 // pred_fallthru
      _
    // Predicated region
    $region30: #{tpu_custom_call.1} parent=1 // pred_check
      _
    $region31: #{tpu_custom_call.1} parent=1 // pred_check_branch
      %93 = sbr.rel (0) target = $region33
    $region32: #{tpu_custom_call.1} parent=1 // pred_region
      %95 = vsyncadd [#allocation14], 0
      %s97 = sshll.u32 %s7, 4
      %s98 = int_to_ptr.hbm [resolvable:$true] %s97
      %s99 = sshll.u32 [#allocation13], 4
      %s100 = int_to_ptr.vmem [resolvable:$true] %s99
      %102 = dma.hbm_to_vmem [thread:$0]  %s98, 64, %s100, [#allocation14]
    $region33: #{tpu_custom_call.1} parent=1 // pred_fallthru
      _
    // Predicated region
    $region34: #{tpu_custom_call.1} parent=1 // pred_check
      _
    $region35: #{tpu_custom_call.1} parent=1 // pred_check_branch
      %104 = sbr.rel (0) target = $region37
    $region36: #{tpu_custom_call.1} parent=1 // pred_region
      %106 = vsyncadd [#allocation14], 0
      %s108 = sshll.u32 %s8, 4
      %s109 = int_to_ptr.hbm [resolvable:$true] %s108
      %s110 = sshll.u32 [#allocation15], 4
      %s111 = int_to_ptr.vmem [resolvable:$true] %s110
      %113 = dma.hbm_to_vmem [thread:$0]  %s109, 64, %s111, [#allocation14]
    $region37: #{tpu_custom_call.1} parent=1 // pred_fallthru
      _
    // Predicated region
    $region38: #{tpu_custom_call.1} parent=1 // pred_check
      _
    $region39: #{tpu_custom_call.1} parent=1 // pred_check_branch
      %115 = sbr.rel (0) target = $region41
    $region40: #{tpu_custom_call.1} parent=1 // pred_region
      _
    $region41: #{tpu_custom_call.1} parent=1 // pred_fallthru
      _
    // Predicated region
    $region42: #{tpu_custom_call.1} parent=1 // pred_check
      _
    $region43: #{tpu_custom_call.1} parent=1 // pred_check_branch
      %117 = sbr.rel (0) target = $region45
    $region44: #{tpu_custom_call.1} parent=1 // pred_region
      %119 = vsyncadd [#allocation17], 0
      %s121 = sshll.u32 %s10, 4
      %s122 = int_to_ptr.hbm [resolvable:$true] %s121
      %s123 = sshll.u32 [#allocation16], 4
      %s124 = int_to_ptr.vmem [resolvable:$true] %s123
      %126 = dma.hbm_to_vmem [thread:$0]  %s122, 64, %s124, [#allocation17]
    $region45: #{tpu_custom_call.1} parent=1 // pred_fallthru
      _
    // Predicated region
    $region46: #{tpu_custom_call.1} parent=1 // pred_check
      _
    $region47: #{tpu_custom_call.1} parent=1 // pred_check_branch
      %128 = sbr.rel (0) target = $region49
    $region48: #{tpu_custom_call.1} parent=1 // pred_region
      %130 = vsyncadd [#allocation17], 0
      %s132 = sshll.u32 %s11, 4
      %s133 = int_to_ptr.hbm [resolvable:$true] %s132
      %s134 = sshll.u32 [#allocation18], 4
      %s135 = int_to_ptr.vmem [resolvable:$true] %s134
      %137 = dma.hbm_to_vmem [thread:$0]  %s133, 64, %s135, [#allocation17]
    $region49: #{tpu_custom_call.1} parent=1 // pred_fallthru
      _
    // Predicated region
    $region50: #{tpu_custom_call.1} parent=1 // pred_check
      _
    $region51: #{tpu_custom_call.1} parent=1 // pred_check_branch
      %139 = sbr.rel (0) target = $region53
    $region52: #{tpu_custom_call.1} parent=1 // pred_region
      %141 = vsyncadd [#allocation20], 0
      %s143 = sshll.u32 %s12, 4
      %s144 = int_to_ptr.hbm [resolvable:$true] %s143
      %s145 = sshll.u32 [#allocation19], 4
      %s146 = int_to_ptr.vmem [resolvable:$true] %s145
      %148 = dma.hbm_to_vmem [thread:$0]  %s144, 64, %s146, [#allocation20]
    $region53: #{tpu_custom_call.1} parent=1 // pred_fallthru
      _
    // Predicated region
    $region54: #{tpu_custom_call.1} parent=1 // pred_check
      _
    $region55: #{tpu_custom_call.1} parent=1 // pred_check_branch
      %150 = sbr.rel (0) target = $region57
    $region56: #{tpu_custom_call.1} parent=1 // pred_region
      %152 = dma.done [#allocation5], 16
    $region57: #{tpu_custom_call.1} parent=1 // pred_fallthru
      _
    // Predicated region
    $region58: #{tpu_custom_call.1} parent=1 // pred_check
      _
    $region59: #{tpu_custom_call.1} parent=1 // pred_check_branch
      %154 = sbr.rel (0) target = $region61
    $region60: #{tpu_custom_call.1} parent=1 // pred_region
      %156 = dma.done [#allocation3], 64
    $region61: #{tpu_custom_call.1} parent=1 // pred_fallthru
      _
    // Predicated region
    $region62: #{tpu_custom_call.1} parent=1 // pred_check
      _
    $region63: #{tpu_custom_call.1} parent=1 // pred_check_branch
      %158 = sbr.rel (0) target = $region65
    $region64: #{tpu_custom_call.1} parent=1 // pred_region
      %160 = dma.done [#allocation8], 64
    $region65: #{tpu_custom_call.1} parent=1 // pred_fallthru
      _
    // Predicated region
    $region66: #{tpu_custom_call.1} parent=1 // pred_check
      _
    $region67: #{tpu_custom_call.1} parent=1 // pred_check_branch
      %162 = sbr.rel (0) target = $region69
    $region68: #{tpu_custom_call.1} parent=1 // pred_region
      %164 = dma.done [#allocation8], 64
    $region69: #{tpu_custom_call.1} parent=1 // pred_fallthru
      _
    // Predicated region
    $region70: #{tpu_custom_call.1} parent=1 // pred_check
      _
    $region71: #{tpu_custom_call.1} parent=1 // pred_check_branch
      %166 = sbr.rel (0) target = $region73
    $region72: #{tpu_custom_call.1} parent=1 // pred_region
      %168 = dma.done [#allocation11], 64
    $region73: #{tpu_custom_call.1} parent=1 // pred_fallthru
      _
    // Predicated region
    $region74: #{tpu_custom_call.1} parent=1 // pred_check
      _
    $region75: #{tpu_custom_call.1} parent=1 // pred_check_branch
      %170 = sbr.rel (0) target = $region77
    $region76: #{tpu_custom_call.1} parent=1 // pred_region
      %172 = dma.done [#allocation11], 64
    $region77: #{tpu_custom_call.1} parent=1 // pred_fallthru
      _
    // Predicated region
    $region78: #{tpu_custom_call.1} parent=1 // pred_check
      _
    $region79: #{tpu_custom_call.1} parent=1 // pred_check_branch
      %174 = sbr.rel (0) target = $region81
    $region80: #{tpu_custom_call.1} parent=1 // pred_region
      %176 = dma.done [#allocation14], 64
    $region81: #{tpu_custom_call.1} parent=1 // pred_fallthru
      _
    // Predicated region
    $region82: #{tpu_custom_call.1} parent=1 // pred_check
      _
    $region83: #{tpu_custom_call.1} parent=1 // pred_check_branch
      %178 = sbr.rel (0) target = $region85
    $region84: #{tpu_custom_call.1} parent=1 // pred_region
      %180 = dma.done [#allocation14], 64
    $region85: #{tpu_custom_call.1} parent=1 // pred_fallthru
      _
    // Predicated region
    $region86: #{tpu_custom_call.1} parent=1 // pred_check
      _
    $region87: #{tpu_custom_call.1} parent=1 // pred_check_branch
      %182 = sbr.rel (0) target = $region89
    $region88: #{tpu_custom_call.1} parent=1 // pred_region
      %184 = dma.done [#allocation17], 64
    $region89: #{tpu_custom_call.1} parent=1 // pred_fallthru
      _
    // Predicated region
    $region90: #{tpu_custom_call.1} parent=1 // pred_check
      _
    $region91: #{tpu_custom_call.1} parent=1 // pred_check_branch
      %186 = sbr.rel (0) target = $region93
    $region92: #{tpu_custom_call.1} parent=1 // pred_region
      %188 = dma.done [#allocation17], 64
    $region93: #{tpu_custom_call.1} parent=1 // pred_fallthru
      _
    // Predicated region
    $region94: #{tpu_custom_call.1} parent=1 // pred_check
      _
    $region95: #{tpu_custom_call.1} parent=1 // pred_check_branch
      %190 = sbr.rel (0) target = $region97
    $region96: #{tpu_custom_call.1} parent=1 // pred_region
      %192 = dma.done [#allocation20], 64
    $region97: #{tpu_custom_call.1} parent=1 // pred_fallthru
      _
    %193 = sfence
    %s194 = sld [smem:[#allocation2]]
    %v195 = vld [vmem:[#allocation6] sm:$0xf]
    %v196 = vstv %s194
    %v197 = vmul.f32 %v196, %v195
    %s198 = sld [smem:[#allocation2 + $0x1]]
    %v199 = vld [vmem:[#allocation7] sm:$0xf]
    %v200 = vstv %s198
    %v201 = vmul.f32 %v200, %v199
    %v202 = vadd.f32 %v197, %v201
    %s203 = sld [smem:[#allocation2 + $0x2]]
    %v204 = vld [vmem:[#allocation9] sm:$0xf]
    %v205 = vstv %s203
    %v206 = vmul.f32 %v205, %v204
    %v207 = vadd.f32 %v202, %v206
    %s208 = sld [smem:[#allocation2 + $0x3]]
    %v209 = vld [vmem:[#allocation10] sm:$0xf]
    %v210 = vstv %s208
    %v211 = vmul.f32 %v210, %v209
    %v212 = vadd.f32 %v207, %v211
    %s213 = sld [smem:[#allocation2 + $0x4]]
    %v214 = vld [vmem:[%s5] sm:$0xf]
    %v215 = vstv %s213
    %v216 = vmul.f32 %v215, %v214
    %v217 = vadd.f32 %v212, %v216
    %s218 = sld [smem:[#allocation2 + $0x5]]
    %v219 = vld [vmem:[#allocation12] sm:$0xf]
    %v220 = vstv %s218
    %v221 = vmul.f32 %v220, %v219
    %v222 = vadd.f32 %v217, %v221
    %s223 = sld [smem:[#allocation2 + $0x6]]
    %v224 = vld [vmem:[#allocation13] sm:$0xf]
    %v225 = vstv %s223
    %v226 = vmul.f32 %v225, %v224
    %v227 = vadd.f32 %v222, %v226
    %s228 = sld [smem:[#allocation2 + $0x7]]
    %v229 = vld [vmem:[#allocation15] sm:$0xf]
    %v230 = vstv %s228
    %v231 = vmul.f32 %v230, %v229
    %v232 = vadd.f32 %v227, %v231
    %s233 = sld [smem:[#allocation2 + $0x8]]
    %v234 = vld [vmem:[%s9] sm:$0xf]
    %v235 = vstv %s233
    %v236 = vmul.f32 %v235, %v234
    %v237 = vadd.f32 %v232, %v236
    %s238 = sld [smem:[#allocation2 + $0x9]]
    %v239 = vld [vmem:[#allocation16] sm:$0xf]
    %v240 = vstv %s238
    %v241 = vmul.f32 %v240, %v239
    %v242 = vadd.f32 %v237, %v241
    %s243 = sld [smem:[#allocation2 + $0xa]]
    %v244 = vld [vmem:[#allocation18] sm:$0xf]
    %v245 = vstv %s243
    %v246 = vmul.f32 %v245, %v244
    %v247 = vadd.f32 %v242, %v246
    %s248 = sld [smem:[#allocation2 + $0xb]]
    %v249 = vld [vmem:[#allocation19] sm:$0xf]
    %v250 = vstv %s248
    %v251 = vmul.f32 %v250, %v249
    %v252 = vadd.f32 %v247, %v251
    %v253 = vlaneseq
    %vm254 = vcmp.ge.s32.totalorder %v253, 0
    %vm255 = vcmp.lt.s32.totalorder %v253, 512
    %vm256 = vmand %vm254, %vm255
    %257 = vst.msk [vmem:[#allocation21] sm:$0xf] %vm256, %v252
    // Predicated region
    $region98: #{tpu_custom_call.1} parent=1 // pred_check
      _
    $region99: #{tpu_custom_call.1} parent=1 // pred_check_branch
      %259 = sbr.rel (0) target = $region101
    $region100: #{tpu_custom_call.1} parent=1 // pred_region
      %261 = vsyncadd [#allocation4], 0
      %s263 = sshll.u32 [#allocation21], 4
      %s264 = int_to_ptr.vmem [resolvable:$true] %s263
      %s265 = sshll.u32 %s13, 4
      %s266 = int_to_ptr.hbm [resolvable:$true] %s265
      %268 = dma.vmem_to_hbm [thread:$0]  %s264, 64, %s266, [#allocation4]
    $region101: #{tpu_custom_call.1} parent=1 // pred_fallthru
      _
    // Predicated region
    $region102: #{tpu_custom_call.1} parent=1 // pred_check
      _
    $region103: #{tpu_custom_call.1} parent=1 // pred_check_branch
      %270 = sbr.rel (0) target = $region105
    $region104: #{tpu_custom_call.1} parent=1 // pred_region
      %272 = dma.done [#allocation4], 64
    $region105: #{tpu_custom_call.1} parent=1 // pred_fallthru
      _
    %273 = vsyncpa [#allocation3], 1
    %274 = vsyncpa [#allocation8], 1
    %275 = vsyncpa [#allocation11], 1
    %276 = vsyncpa [#allocation14], 1
    %277 = vsyncpa [#allocation17], 1
    %278 = vsyncpa [#allocation20], 1
    %279 = vsyncpa [#allocation4], 1
    %280 = vsyncpa [#allocation5], 1

</llo_original>
